<compile_context>
chip_gen: v7x
topology: tpu7x:2x2x1
jax: 0.10.0
libtpu: 0.0.40
codegen_flags: <defaults>
</compile_context>

<pallas_src>
import math
from functools import partial

import jax
import jax.numpy as jnp
from jax.experimental import pallas as pl
from jax.experimental.pallas import tpu as pltpu


def _round_up(x, m):
    return ((x + m - 1) // m) * m


def _fused_location_kernel(x_ref, w_ref, o_ref):
    # x_ref: (TILE_BT, K*Cin)  im2col rows
    # w_ref: (K*Cin, A)        fused conv+dense weight (resident across all row tiles)
    # o_ref: (TILE_BT, A)
    o_ref[...] = jnp.dot(
        x_ref[...], w_ref[...], preferred_element_type=jnp.float32
    ).astype(o_ref.dtype)


@partial(jax.jit, static_argnames=("use_bf16",))
def location_layer_forward(x, w_conv, w_dense, use_bf16=False):
    """x: (B, 2, T) float32 (PyTorch NCW layout).
    w_conv: (n_filters, 2, K)  torch Conv1d weight layout.
    w_dense: (attention_dim, n_filters)  torch Linear weight layout.
    Returns (B, T, attention_dim) float32."""
    B, Cin, T = x.shape
    F, Cin2, K = w_conv.shape
    assert Cin == Cin2
    # 'same' padding decomposition below only matches PyTorch for odd kernel sizes.
    assert K % 2 == 1, "kernel_size must be odd"
    A = w_dense.shape[0]
    pad = (K - 1) // 2
    KC = K * Cin

    # ---- Weight fusion: (conv -> dense) == single (K*Cin, A) matrix ----
    wconv_kcf = jnp.transpose(w_conv, (2, 1, 0))       # (K, Cin, F)
    wdense_fa = jnp.transpose(w_dense, (1, 0))         # (F, A)
    w_fused = jnp.einsum("kcf,fa->kca", wconv_kcf, wdense_fa).reshape(KC, A)

    # ---- im2col in the wrapper (transpose + pad + shifted windows, fused under jit) ----
    x_btc = jnp.transpose(x, (0, 2, 1))                              # (B, T, Cin)
    x_pad = jnp.pad(x_btc, ((0, 0), (pad, pad), (0, 0)))             # (B, T+K-1, Cin)
    cols = jnp.concatenate(                                          # (B, T, K*Cin)
        [x_pad[:, k:k + T, :] for k in range(K)], axis=-1
    )

    BT = B * T
    TILE_BT = min(512, _round_up(BT, 8))     # sublane-dense row tiles, cap for VMEM (v7x-safe)
    BT_pad = _round_up(BT, TILE_BT)
    x2d = cols.reshape(BT, KC)
    if BT_pad != BT:
        x2d = jnp.pad(x2d, ((0, BT_pad - BT), (0, 0)))

    compute_dtype = jnp.bfloat16 if use_bf16 else jnp.float32
    x2d = x2d.astype(compute_dtype)
    w_fused = w_fused.astype(compute_dtype)

    itemsize = jnp.dtype(compute_dtype).itemsize
    cost = pl.CostEstimate(
        flops=2 * BT_pad * KC * A,
        transcendentals=0,
        bytes_accessed=BT_pad * KC * itemsize + KC * A * itemsize + BT_pad * A * 4,
    )

    out2d = pl.pallas_call(
        _fused_location_kernel,
        out_shape=jax.ShapeDtypeStruct((BT_pad, A), jnp.float32),
        grid=(BT_pad // TILE_BT,),
        in_specs=[
            pl.BlockSpec((TILE_BT, KC), lambda i: (i, 0)),
            pl.BlockSpec((KC, A), lambda i: (0, 0)),   # weight tile pinned across row tiles
        ],
        out_specs=pl.BlockSpec((TILE_BT, A), lambda i: (i, 0)),
        compiler_params=pltpu.CompilerParams(dimension_semantics=("parallel",)),
        cost_estimate=cost,
    )(x2d, w_fused)

    return out2d[:BT].reshape(B, T, A)


def _xavier_uniform(key, shape, fan_in, fan_out, gain):
    bound = gain * math.sqrt(6.0 / (fan_in + fan_out))
    return jax.random.uniform(key, shape, jnp.float32, -bound, bound)


def _reference(x, w_conv, w_dense):
    # Pure-JAX reference of the PyTorch forward (for correctness check).
    B, Cin, T = x.shape
    F, _, K = w_conv.shape
    pad = (K - 1) // 2
    x_btc = jnp.transpose(x, (0, 2, 1))
    x_pad = jnp.pad(x_btc, ((0, 0), (pad, pad), (0, 0)))
    conv = jnp.zeros((B, T, F), jnp.float32)
    for k in range(K):
        conv = conv + jnp.einsum("btc,cf->btf", x_pad[:, k:k + T, :], w_conv[:, :, k].T)
    return jnp.einsum("btf,af->bta", conv, w_dense)


if __name__ == "__main__":
    # Small, module-consistent shapes.
    B, T = 2, 16
    NVIDIA_local_channel = 2
    n_filters, kernel_size, attention_dim = 8, 5, 16

    key = jax.random.PRNGKey(0)
    k_x, k_conv, k_dense = jax.random.split(key, 3)

    x = jax.random.normal(k_x, (B, NVIDIA_local_channel, T), jnp.float32)

    # Conv1d weight (out, in, K), xavier_uniform with gain('linear') = 1.0
    w_conv = _xavier_uniform(
        k_conv, (n_filters, NVIDIA_local_channel, kernel_size),
        fan_in=NVIDIA_local_channel * kernel_size,
        fan_out=n_filters * kernel_size, gain=1.0)

    # Linear weight (out, in), xavier_uniform with gain('tanh') = 5/3
    w_dense = _xavier_uniform(
        k_dense, (attention_dim, n_filters),
        fan_in=n_filters, fan_out=attention_dim, gain=5.0 / 3.0)

    out = location_layer_forward(x, w_conv, w_dense)
    out = jax.block_until_ready(out)

    ref = _reference(x, w_conv, w_dense)
    assert out.shape == (B, T, attention_dim)
    assert jnp.allclose(out, ref, atol=1e-5, rtol=1e-5)

    print("KERNEL_OK")
</pallas_src>

<mosaic_0001>
module attributes {stable_mosaic.version = 11 : i64} {
  func.func @_fused_location_kernel(%arg0: i32, %arg1: memref<32x10xf32, #tpu.memory_space<vmem>>, %arg2: memref<10x16xf32, #tpu.memory_space<vmem>>, %arg3: memref<32x16xf32, #tpu.memory_space<vmem>>) attributes {dimension_semantics = [#tpu.dimension_semantics<parallel>], iteration_bounds = array<i64: 1>, scalar_prefetch = 0 : i64, scratch_operands = 0 : i64, tpu.core_type = #tpu.core_type<tc>, window_params = [{transform_indices = @transform_0, window_bounds = array<i64: 32, 10>}, {pipeline_mode = #tpu.pipeline_mode<synchronous>, transform_indices = @transform_1, window_bounds = array<i64: 10, 16>}, {transform_indices = @transform_2, window_bounds = array<i64: 32, 16>}]} {
    %c0 = arith.constant 0 : index
    %c0_0 = arith.constant 0 : index
    %0 = vector.load %arg1[%c0, %c0_0] : memref<32x10xf32, #tpu.memory_space<vmem>>, vector<32x10xf32>
    %c0_1 = arith.constant 0 : index
    %c0_2 = arith.constant 0 : index
    %1 = vector.load %arg2[%c0_1, %c0_2] : memref<10x16xf32, #tpu.memory_space<vmem>>, vector<10x16xf32>
    %cst = arith.constant dense<0.000000e+00> : vector<32x16xf32>
    %2 = tpu.matmul %0, %1, %cst {dimension_numbers = #tpu.dot_dimension_numbers<[1], [0], [0], [1], [0, 0, 1, 1], [], []>} : vector<32x10xf32>, vector<10x16xf32>, vector<32x16xf32> -> vector<32x16xf32>
    %c0_3 = arith.constant 0 : index
    %c0_4 = arith.constant 0 : index
    %3 = vector.load %arg3[%c0_3, %c0_4] : memref<32x16xf32, #tpu.memory_space<vmem>>, vector<32x16xf32>
    tpu.vector_store %arg3[%c0_3, %c0_4], %2 {strides = array<i32>} : memref<32x16xf32, #tpu.memory_space<vmem>>, vector<32x16xf32>,
    return
  }
  func.func @transform_0(%arg0: i32) -> (i32, i32) {
    %c0_i32 = arith.constant 0 : i32
    %c0_i32_0 = arith.constant 0 : i32
    return %arg0, %c0_i32 : i32, i32
  }
  func.func @transform_1(%arg0: i32) -> (i32, i32) {
    %c0_i32 = arith.constant 0 : i32
    %c0_i32_0 = arith.constant 0 : i32
    %c0_i32_1 = arith.constant 0 : i32
    return %c0_i32, %c0_i32_0 : i32, i32
  }
  func.func @transform_2(%arg0: i32) -> (i32, i32) {
    %c0_i32 = arith.constant 0 : i32
    %c0_i32_0 = arith.constant 0 : i32
    return %arg0, %c0_i32 : i32, i32
  }
}

</mosaic_0001>

<llo_original>
// kernel: location_layer_forward.1
$region0: #{location_layer_forward.1}
  #allocation0 [shape = 'u32[]', space=smem, size = 0x4, offset = 0x4, fixed_abs, tag = 'smem constant byte address 0x4 - core index']
  #allocation1 [shape = 'u32[144,128]{1,0:T(1,128)}', space=vmem, size = 0x12000, scoped, tag = 'internal scratch']
  %s0 = inlined_call_operand.vmem [shape: f32[32,10], index: 0, kind: input, shape index: {}]
  %s1 = inlined_call_operand.vmem [shape: f32[10,16], index: 1, kind: input, shape index: {}]
  %s2 = inlined_call_operand.hbm [shape: f32[32,16], index: 2, kind: output, shape index: {}]
  %s3 = sld [smem:[#allocation0]]
  $region18: #{location_layer_forward.1} parent=0
    _
  %s5 = ssub.s32 1, %s3
  %s6 = scalar_select 0, %s5, %s3
  $region1: #{location_layer_forward.1} parent=0
    #allocation2 [shape = 'u8[16384]{0}', space=vmem, size = 0x4000, scoped, tag = 'output window, operand 0, single buffered']
    #allocation3 [shape = 's32[1]{0}', space=sflag, size = 0x4, scoped, tag = 'scoped memory for location_layer_forward.1']
    %7 = vsyncpa [#allocation3], 0
    // Predicated region
    $region2: #{location_layer_forward.1} parent=1 // pred_check
      _
    $region3: #{location_layer_forward.1} parent=1 // pred_check_branch
      %9 = sbr.rel (0) target = $region5
    $region4: #{location_layer_forward.1} parent=1 // pred_region
      _
    $region5: #{location_layer_forward.1} parent=1 // pred_fallthru
      _
    // Predicated region
    $region6: #{location_layer_forward.1} parent=1 // pred_check
      _
    $region7: #{location_layer_forward.1} parent=1 // pred_check_branch
      %11 = sbr.rel (0) target = $region9
    $region8: #{location_layer_forward.1} parent=1 // pred_region
      _
    $region9: #{location_layer_forward.1} parent=1 // pred_fallthru
      _
    %v12 = vld [vmem:[%s0] sm:$0xff]
    %v13 = vld [vmem:[%s0 + $0x8] sm:$0xff]
    %v14 = vld [vmem:[%s0 + $0x10] sm:$0xff]
    %v15 = vld [vmem:[%s0 + $0x18] sm:$0xff]
    %v16 = vld [vmem:[%s1] sm:$0xff]
    %v17 = vld [vmem:[%s1 + $0x8] sm:$0x3]
    %vm18 = vcmask 80896
    %v20 = vsel %vm18, %v12, 0
    %v23 = vsel %vm18, %v13, 0
    %v26 = vsel %vm18, %v14, 0
    %v29 = vsel %vm18, %v15, 0
    %vm31 = vcmask 1041408
    %v33 = vsel %vm31, %v17, 0
    %35 = vmatprep.subr.mxu0 0.0
    %36 = vmatpush1.msra.mxu0 %v16
    %37 = vmatprep.subr.mxu0 0.0
    %38 = vmatpush1.msra.mxu0 %v33
    %39 = vmatprep.subr.mxu0 0.0
    %40 = vmatpush1.msra.mxu0 0.0
    %41 = vmatprep.subr.mxu0 0.0
    %42 = vmatpush1.msra.mxu0 0.0
    %43 = vmatprep.subr.mxu0 0.0
    %44 = vmatpush1.msra.mxu0 0.0
    %45 = vmatprep.subr.mxu0 0.0
    %46 = vmatpush1.msra.mxu0 0.0
    %47 = vmatprep.subr.mxu0 0.0
    %48 = vmatpush1.msra.mxu0 0.0
    %49 = vmatprep.subr.mxu0 0.0
    %50 = vmatpush1.msra.mxu0 0.0
    %51 = vmatprep.subr.mxu0 0.0
    %52 = vmatpush1.msra.mxu0 0.0
    %53 = vmatprep.subr.mxu0 0.0
    %54 = vmatpush1.msra.mxu0 0.0
    %55 = vmatprep.subr.mxu0 0.0
    %56 = vmatpush1.msra.mxu0 0.0
    %57 = vmatprep.subr.mxu0 0.0
    %58 = vmatpush1.msra.mxu0 0.0
    %59 = vmatprep.subr.mxu0 0.0
    %60 = vmatpush1.msra.mxu0 0.0
    %61 = vmatprep.subr.mxu0 0.0
    %62 = vmatpush1.msra.mxu0 0.0
    %63 = vmatprep.subr.mxu0 0.0
    %64 = vmatpush1.msra.mxu0 0.0
    %65 = vmatprep.subr.mxu0 0.0
    %66 = vmatpush1.msra.mxu0 0.0
    %67 = vmatprep.subr.mxu0 0.0
    %68 = vmatpush1.msra.mxu0 0.0
    %69 = vmatprep.subr.mxu0 0.0
    %70 = vmatpush1.msra.mxu0 0.0
    %71 = vmatprep.subr.mxu0 0.0
    %72 = vmatpush1.msra.mxu0 0.0
    %73 = vmatprep.subr.mxu0 0.0
    %74 = vmatpush1.msra.mxu0 0.0
    %75 = vmatprep.subr.mxu0 0.0
    %76 = vmatpush1.msra.mxu0 0.0
    %77 = vmatprep.subr.mxu0 0.0
    %78 = vmatpush1.msra.mxu0 0.0
    %79 = vmatprep.subr.mxu0 0.0
    %80 = vmatpush1.msra.mxu0 0.0
    %81 = vmatprep.subr.mxu0 0.0
    %82 = vmatpush1.msra.mxu0 0.0
    %83 = vmatprep.subr.mxu0 0.0
    %84 = vmatpush1.msra.mxu0 0.0
    %85 = vmatprep.subr.mxu0 0.0
    %86 = vmatpush1.msra.mxu0 0.0
    %87 = vmatprep.subr.mxu0 0.0
    %88 = vmatpush1.msra.mxu0 0.0
    %89 = vmatprep.subr.mxu0 0.0
    %90 = vmatpush1.msra.mxu0 0.0
    %91 = vmatprep.subr.mxu0 0.0
    %92 = vmatpush1.msra.mxu0 0.0
    %93 = vmatprep.subr.mxu0 0.0
    %94 = vmatpush1.msra.mxu0 0.0
    %95 = vmatprep.subr.mxu0 0.0
    %96 = vmatpush1.msra.mxu0 0.0
    %97 = vmatprep.subr.mxu0 0.0
    %98 = vmatpush1.msra.mxu0 0.0
    %99 = vmatprep.mubr.f32.mxu0 0.0
    %100 = vmatmul.mubr.f32.gmra.mrb[0].mxu0 %v20
    %v101 = vpop.f32.mrb[0].mxu0
    %v102 = vadd.f32 0.0, %v101
    %v103 = vpop.f32.mrb[0].mxu0
    %104 = vmatprep.mubr.f32.mxu0 0.0
    %105 = vmatmul.mubr.f32.gmra.mrb[0].mxu0 %v23
    %v106 = vpop.f32.mrb[0].mxu0
    %v107 = vadd.f32 0.0, %v106
    %v108 = vpop.f32.mrb[0].mxu0
    %109 = vmatprep.mubr.f32.mxu0 0.0
    %110 = vmatmul.mubr.f32.gmra.mrb[0].mxu0 %v26
    %v111 = vpop.f32.mrb[0].mxu0
    %v112 = vadd.f32 0.0, %v111
    %v113 = vpop.f32.mrb[0].mxu0
    %114 = vmatprep.mubr.f32.mxu0 0.0
    %115 = vmatmul.mubr.f32.gmra.mrb[0].mxu0 %v29
    %v116 = vpop.f32.mrb[0].mxu0
    %v117 = vadd.f32 0.0, %v116
    %v118 = vpop.f32.mrb[0].mxu0
    %119 = vdwg.mxu0
    %vm120 = vcmask 130048
    %121 = vst.msk [vmem:[#allocation2] sm:$0xff] %vm120, %v102
    %122 = vst.msk [vmem:[#allocation2 + $0x8] sm:$0xff] %vm120, %v107
    %123 = vst.msk [vmem:[#allocation2 + $0x10] sm:$0xff] %vm120, %v112
    %124 = vst.msk [vmem:[#allocation2 + $0x18] sm:$0xff] %vm120, %v117
    // Predicated region
    $region10: #{location_layer_forward.1} parent=1 // pred_check
      _
    $region11: #{location_layer_forward.1} parent=1 // pred_check_branch
      %126 = sbr.rel (0) target = $region13
    $region12: #{location_layer_forward.1} parent=1 // pred_region
      %s128 = ssub.s32 512, 512
      %129 = vsyncadd [#allocation3], %s128
      %s130 = sshll.u32 [#allocation2], 4
      %s131 = int_to_ptr.vmem [resolvable:$true] %s130
      %136 = dma.vmem_to_hbm [thread:$0]  %s131, 512, %s2, [#allocation3], 128, 128, 8
    $region13: #{location_layer_forward.1} parent=1 // pred_fallthru
      _
    // Predicated region
    $region14: #{location_layer_forward.1} parent=1 // pred_check
      _
    $region15: #{location_layer_forward.1} parent=1 // pred_check_branch
      %138 = sbr.rel (0) target = $region17
    $region16: #{location_layer_forward.1} parent=1 // pred_region
      %139 = dma.done [#allocation3], 512
    $region17: #{location_layer_forward.1} parent=1 // pred_fallthru
      _
    %140 = vsyncpa [#allocation3], 1

</llo_original>
